<compile_context>
chip_gen: v7x
topology: tpu7x:2x2x1
jax: 0.10.0
libtpu: 0.0.40
codegen_flags: <defaults>
</compile_context>

<pallas_src>
import jax
import jax.numpy as jnp
import numpy as np
from jax import lax
from jax.experimental import pallas as pl
from jax.experimental.pallas import tpu as pltpu


def _round_up(x, m):
    return (x + m - 1) // m * m


# --------------------- pltpu.roll direction probe ---------------------------
# Tiny one-time probe so the stored rotate amounts are correct regardless of
# the roll sign convention of the installed JAX/Mosaic version.

_ROLL_SIGN = None


def _roll_shift_sign():
    """Returns s such that pltpu.roll(x, (s*off) % n, axis)[..., q] == x[..., (q+off) % n]."""
    global _ROLL_SIGN
    if _ROLL_SIGN is None:
        def probe(x_ref, o_ref):
            o_ref[...] = pltpu.roll(x_ref[...], 1, axis=1)

        x = lax.broadcasted_iota(jnp.int32, (8, 128), 1)       # x[i, j] = j
        y = pl.pallas_call(
            probe, out_shape=jax.ShapeDtypeStruct((8, 128), jnp.int32))(x)
        # jnp.roll convention: y[0, 1] == x[0, 0] == 0  ->  need shift = -off
        _ROLL_SIGN = -1 if int(y[0, 1]) == 0 else +1
    return _ROLL_SIGN


# ------------------------------- kernel --------------------------------------

def make_aspp_kernel():
    def kernel(shift_ref, x_ref, w_ref, mask_ref, base_ref, o_ref):
        k = pl.program_id(1)

        # One (Cout_p, Cin) @ (Cin, HW_p) MXU matmul per tap-chunk, f32 accum.
        p = jnp.dot(w_ref[0], x_ref[0], preferred_element_type=jnp.float32)

        # Apply the tap's flattened spatial offset to the *product* with a
        # single XLU lane rotate + precomputed zero-padding mask.  The
        # accumulate below is then a full-tile, unmasked store.
        shifted = pltpu.roll(p, shift_ref[k], axis=1)           # (Cout_p, HW_p)
        contrib = shifted * mask_ref[0]                         # * (1, HW_p)

        @pl.when(k == 0)
        def _():
            # base = hoisted pooled branch + fully folded bias, per batch.
            o_ref[0] = contrib + base_ref[0]                    # + (Cout_p, 1)

        @pl.when(k > 0)
        def _():
            o_ref[0] = o_ref[0] + contrib

    return kernel


def aspp_forward(x_nchw, kparams, shifts):
    """x_nchw: (B, Cin, H, W) float32 -> (B, Cout, H, W) float32."""
    B, Cin, H, W = x_nchw.shape
    HW = H * W
    HW_p = _round_up(HW, 128)                 # lane-dense output / product

    w_all = kparams["w_all"]                  # (K, Cout_p, Cin) bf16
    K, Cout_p, _ = w_all.shape
    Cout = kparams["bias"].shape[-1]

    # ---- pooled branch hoisted out of the kernel (exact, f32) ----
    # AdaptiveAvgPool2d(1) -> 1x1 conv -> bilinear upsample of a 1x1 map with
    # align_corners=True == spatially constant broadcast; folded with the
    # output projection and every branch bias.
    mean = jnp.mean(x_nchw.reshape(B, Cin, HW), axis=2)          # (B, Cin) f32
    base = mean @ kparams["wp"] + kparams["bias"][None, :]       # (B, Cout) f32
    base = jnp.pad(base, ((0, 0), (0, Cout_p - Cout)))[:, :, None]  # (B, Cout_p, 1)

    # ---- kernel input: NCHW reshaped (no transpose) to (B, Cin, HW_p) bf16 ----
    xk = x_nchw.reshape(B, Cin, HW)
    if HW_p != HW:
        xk = jnp.pad(xk, ((0, 0), (0, 0), (0, HW_p - HW)))
    xk = xk.astype(w_all.dtype)

    # ---- static per-chunk boundary masks + rotate amounts (host-side) ----
    sign = _roll_shift_sign()
    masks_np = np.zeros((K, 1, HW_p), np.float32)
    roll_np = np.zeros((K,), np.int32)
    ii, jj = np.meshgrid(np.arange(H), np.arange(W), indexing="ij")
    for t, (dy, dx) in enumerate(shifts):
        valid = ((ii + dy >= 0) & (ii + dy < H) &
                 (jj + dx >= 0) & (jj + dx < W)).reshape(-1)
        masks_np[t, 0, :HW] = valid.astype(np.float32)
        roll_np[t] = (sign * (dy * W + dx)) % HW_p
    masks = jnp.asarray(masks_np)
    roll_shift = jnp.asarray(roll_np)

    grid_spec = pltpu.PrefetchScalarGridSpec(
        num_scalar_prefetch=1,                 # rotate-amount table -> SMEM
        grid=(B, K),                           # batch (parallel) x tap-chunk (reduction)
        in_specs=[
            pl.BlockSpec((1, Cin, HW_p), lambda b, k, s: (b, 0, 0)),    # x: resident per b
            pl.BlockSpec((1, Cout_p, Cin), lambda b, k, s: (k, 0, 0)),  # weight chunk stream
            pl.BlockSpec((1, 1, HW_p), lambda b, k, s: (k, 0, 0)),      # boundary mask
            pl.BlockSpec((1, Cout_p, 1), lambda b, k, s: (b, 0, 0)),    # pooled+bias base
        ],
        out_specs=pl.BlockSpec((1, Cout_p, HW_p), lambda b, k, s: (b, 0, 0)),
    )

    flops = 2 * B * K * Cout_p * Cin * HW_p
    bytes_accessed = (xk.size * 2 + w_all.size * 2 + masks.size * 4
                      + base.size * 4 + B * Cout_p * HW_p * 4)

    out = pl.pallas_call(
        make_aspp_kernel(),
        out_shape=jax.ShapeDtypeStruct((B, Cout_p, HW_p), jnp.float32),
        grid_spec=grid_spec,
        compiler_params=pltpu.CompilerParams(
            dimension_semantics=("parallel", "arbitrary"),
            vmem_limit_bytes=32 * 1024 * 1024),
        cost_estimate=pl.CostEstimate(flops=flops, transcendentals=0,
                                      bytes_accessed=bytes_accessed),
    )(roll_shift, xk, w_all, masks, base)

    # (B, Cout_p, HW_p) -> (B, Cout, H, W): slice + reshape only, no transpose.
    return out[:, :Cout, :HW].reshape(B, Cout, H, W)


# ------------------------- parameter construction ---------------------------

def init_params(key, Cin, Cout):
    """PyTorch-layout params (OIHW conv weights), deterministic."""
    ks = jax.random.split(key, 12)
    s = 0.05
    return {
        "w_pool": jax.random.normal(ks[0], (Cout, Cin, 1, 1), jnp.float32) * s,
        "b_pool": jax.random.normal(ks[1], (Cout,), jnp.float32) * s,
        "w1":  jax.random.normal(ks[2], (Cout, Cin, 1, 1), jnp.float32) * s,
        "b1":  jax.random.normal(ks[3], (Cout,), jnp.float32) * s,
        "w6":  jax.random.normal(ks[4], (Cout, Cin, 3, 3), jnp.float32) * s,
        "b6":  jax.random.normal(ks[5], (Cout,), jnp.float32) * s,
        "w12": jax.random.normal(ks[6], (Cout, Cin, 3, 3), jnp.float32) * s,
        "b12": jax.random.normal(ks[7], (Cout,), jnp.float32) * s,
        "w18": jax.random.normal(ks[8], (Cout, Cin, 3, 3), jnp.float32) * s,
        "b18": jax.random.normal(ks[9], (Cout,), jnp.float32) * s,
        "w_out": jax.random.normal(ks[10], (Cout, 5 * Cout, 1, 1), jnp.float32) * s,
        "b_out": jax.random.normal(ks[11], (Cout,), jnp.float32) * s,
    }


def to_kernel_params(pt, H, W, dilations=(6, 12, 18), matmul_dtype=jnp.bfloat16):
    """Fold the final 1x1 projection + all biases into per-tap weights (exact:
    the module is linear) and stack the surviving taps as (K, Cout_p, Cin)."""
    Cout = pt["b_out"].shape[0]
    Cout_p = _round_up(Cout, 8)                  # sublane-aligned chunk height
    f32 = jnp.float32

    wp = pt["w_pool"][:, :, 0, 0].T.astype(f32)                    # (Cin, Cout)
    w1 = pt["w1"][:, :, 0, 0].T.astype(f32)                        # (Cin, Cout)
    w3 = [jnp.transpose(pt["w%d" % d], (2, 3, 1, 0)).astype(f32)   # (3,3,Cin,Cout)
          for d in dilations]

    wo2d = pt["w_out"][:, :, 0, 0].astype(f32)                     # (Cout, 5*Cout)
    wo = [wo2d[:, i * Cout:(i + 1) * Cout].T for i in range(5)]    # (Cout_br, Cout)

    # folded bias: all branch biases pushed through the projection + b_out
    bias = (pt["b_pool"] @ wo[0] + pt["b1"] @ wo[1]
            + pt["b%d" % dilations[0]] @ wo[2]
            + pt["b%d" % dilations[1]] @ wo[3]
            + pt["b%d" % dilations[2]] @ wo[4]
            + pt["b_out"]).astype(f32)                             # (Cout,)

    # chunk 0: every zero-offset tap (1x1 conv + centre tap of each dilation)
    w_center = w1 @ wo[1]
    for i in range(len(dilations)):
        w_center = w_center + w3[i][1, 1] @ wo[2 + i]

    chunks, shifts = [w_center], [(0, 0)]
    for i, d in enumerate(dilations):
        for ky in range(3):
            for kx in range(3):
                if ky == 1 and kx == 1:
                    continue
                dy, dx = (ky - 1) * d, (kx - 1) * d
                if abs(dy) >= H or abs(dx) >= W:
                    continue                 # tap reads only zero padding
                chunks.append(w3[i][ky, kx] @ wo[2 + i])
                shifts.append((dy, dx))

    w_all = jnp.stack([c.T for c in chunks], axis=0)               # (K, Cout, Cin)
    if Cout_p != Cout:
        w_all = jnp.pad(w_all, ((0, 0), (0, Cout_p - Cout), (0, 0)))

    kparams = {
        "w_all": w_all.astype(matmul_dtype),   # (K, Cout_p, Cin) bf16
        "wp": (wp @ wo[0]).astype(f32),        # pooled-branch weight (wrapper, f32)
        "bias": bias,                          # (Cout,) folded bias (wrapper, f32)
    }
    return kparams, shifts


# ----------------------------- pure-JAX reference ---------------------------

def aspp_ref(x, pt, dilations=(6, 12, 18)):
    B, C, H, W = x.shape
    dn = ("NCHW", "OIHW", "NCHW")

    def conv(inp, w, b, pad, dil):
        y = lax.conv_general_dilated(inp, w, (1, 1), [(pad, pad), (pad, pad)],
                                     rhs_dilation=(dil, dil), dimension_numbers=dn)
        return y + b.reshape(1, -1, 1, 1)

    mean = jnp.mean(x, axis=(2, 3), keepdims=True)
    pooled = conv(mean, pt["w_pool"], pt["b_pool"], 0, 1)
    pooled = jnp.broadcast_to(pooled, (B, pooled.shape[1], H, W))  # bilinear from 1x1 = broadcast
    a1 = conv(x, pt["w1"], pt["b1"], 0, 1)
    a6 = conv(x, pt["w6"], pt["b6"], dilations[0], dilations[0])
    a12 = conv(x, pt["w12"], pt["b12"], dilations[1], dilations[1])
    a18 = conv(x, pt["w18"], pt["b18"], dilations[2], dilations[2])
    cat = jnp.concatenate([pooled, a1, a6, a12, a18], axis=1)
    return conv(cat, pt["w_out"], pt["b_out"], 0, 1)


# ------------------------------------ main -----------------------------------

if __name__ == "__main__":
    B, Cin, Cout, H, W = 2, 32, 16, 16, 16
    dilations = (6, 12, 18)

    key = jax.random.PRNGKey(0)
    kx, kp = jax.random.split(key)
    x = jax.random.normal(kx, (B, Cin, H, W), jnp.float32)

    pt_params = init_params(kp, Cin, Cout)
    k_params, shifts = to_kernel_params(pt_params, H, W, dilations,
                                        matmul_dtype=jnp.bfloat16)

    out = jax.block_until_ready(aspp_forward(x, k_params, shifts))
    ref = jax.block_until_ready(aspp_ref(x, pt_params, dilations))

    # bf16 matmul operands (f32 accumulation) -> looser tolerance than pure f32
    np.testing.assert_allclose(np.asarray(out), np.asarray(ref), rtol=2e-2, atol=2e-2)
    print("KERNEL_OK")
</pallas_src>

<mosaic_0001>
module attributes {stable_mosaic.version = 11 : i64} {
  func.func @probe(%arg0: memref<8x128xi32, #tpu.memory_space<vmem>>, %arg1: memref<8x128xi32, #tpu.memory_space<vmem>>) attributes {dimension_semantics = [], scalar_prefetch = 0 : i64, scratch_operands = 0 : i64, tpu.core_type = #tpu.core_type<tc>} {
    %c0 = arith.constant 0 : index
    %c0_0 = arith.constant 0 : index
    %0 = vector.load %arg0[%c0, %c0_0] : memref<8x128xi32, #tpu.memory_space<vmem>>, vector<8x128xi32>
    %c1_i32 = arith.constant 1 : i32
    %1 = tpu.dynamic_rotate %0 by %c1_i32 dim 1 : vector<8x128xi32>, i32 -> vector<8x128xi32>
    %c0_1 = arith.constant 0 : index
    %c0_2 = arith.constant 0 : index
    %2 = vector.load %arg1[%c0_1, %c0_2] : memref<8x128xi32, #tpu.memory_space<vmem>>, vector<8x128xi32>
    tpu.vector_store %arg1[%c0_1, %c0_2], %1 {strides = array<i32>} : memref<8x128xi32, #tpu.memory_space<vmem>>, vector<8x128xi32>,
    return
  }
}

</mosaic_0001>

<llo_original>
// kernel: tpu_custom_call.1
$region0: #{tpu_custom_call.1}
  #allocation0 [shape = 'u32[]', space=smem, size = 0x4, offset = 0x4, fixed_abs, tag = 'smem constant byte address 0x4 - core index']
  #allocation1 [shape = 'u32[144,128]{1,0:T(1,128)}', space=vmem, size = 0x12000, scoped, tag = 'internal scratch']
  %s0 = inlined_call_operand.hbm [shape: s32[8,128], index: 0, kind: input, shape index: {}]
  %s1 = inlined_call_operand.hbm [shape: s32[8,128], index: 1, kind: output, shape index: {}]
  %s2 = sld [smem:[#allocation0]]
  $region18: #{tpu_custom_call.1} parent=0
    _
  %s4 = ssub.s32 1, %s2
  %s5 = scalar_select 0, %s4, %s2
  $region1: #{tpu_custom_call.1} parent=0
    #allocation2 [shape = 'u8[4096]{0}', space=vmem, size = 0x1000, scoped, tag = 'input window, operand 0, single buffered']
    #allocation3 [shape = 's32[1]{0}', space=sflag, size = 0x4, scoped, tag = 'scoped memory for tpu_custom_call.1']
    #allocation4 [shape = 's32[1]{0}', space=sflag, size = 0x4, scoped, tag = 'scoped memory for tpu_custom_call.1']
    #allocation5 [shape = 'u8[4096]{0}', space=vmem, size = 0x1000, scoped, tag = 'output window, operand 0, single buffered']
    %6 = vsyncpa [#allocation3], 0
    %7 = vsyncpa [#allocation4], 0
    // Predicated region
    $region2: #{tpu_custom_call.1} parent=1 // pred_check
      _
    $region3: #{tpu_custom_call.1} parent=1 // pred_check_branch
      %9 = sbr.rel (0) target = $region5
    $region4: #{tpu_custom_call.1} parent=1 // pred_region
      %s11 = ssub.s32 128, 128
      %12 = vsyncadd [#allocation3], %s11
      %s14 = sshll.u32 [#allocation2], 4
      %s15 = int_to_ptr.vmem [resolvable:$true] %s14
      %17 = dma.hbm_to_vmem [thread:$0]  %s0, 128, %s15, [#allocation3]
    $region5: #{tpu_custom_call.1} parent=1 // pred_fallthru
      _
    // Predicated region
    $region6: #{tpu_custom_call.1} parent=1 // pred_check
      _
    $region7: #{tpu_custom_call.1} parent=1 // pred_check_branch
      %19 = sbr.rel (0) target = $region9
    $region8: #{tpu_custom_call.1} parent=1 // pred_region
      %20 = dma.done [#allocation3], 128
    $region9: #{tpu_custom_call.1} parent=1 // pred_fallthru
      _
    %v21 = vld [vmem:[#allocation2] sm:$0xff]
    %22 = vrot.lane.b32.xlu0 %v21, 1
    %v23 = vpop.permute.xlu0 %22
    %24 = vst [vmem:[#allocation5] sm:$0xff] %v23
    // Predicated region
    $region10: #{tpu_custom_call.1} parent=1 // pred_check
      _
    $region11: #{tpu_custom_call.1} parent=1 // pred_check_branch
      %26 = sbr.rel (0) target = $region13
    $region12: #{tpu_custom_call.1} parent=1 // pred_region
      %s28 = ssub.s32 128, 128
      %29 = vsyncadd [#allocation4], %s28
      %s31 = sshll.u32 [#allocation5], 4
      %s32 = int_to_ptr.vmem [resolvable:$true] %s31
      %34 = dma.vmem_to_hbm [thread:$0]  %s32, 128, %s1, [#allocation4]
    $region13: #{tpu_custom_call.1} parent=1 // pred_fallthru
      _
    // Predicated region
    $region14: #{tpu_custom_call.1} parent=1 // pred_check
      _
    $region15: #{tpu_custom_call.1} parent=1 // pred_check_branch
      %36 = sbr.rel (0) target = $region17
    $region16: #{tpu_custom_call.1} parent=1 // pred_region
      %37 = dma.done [#allocation4], 128
    $region17: #{tpu_custom_call.1} parent=1 // pred_fallthru
      _
    %38 = vsyncpa [#allocation3], 1
    %39 = vsyncpa [#allocation4], 1

</llo_original>
